<compile_context>
chip_gen: v7x
topology: tpu7x:2x2x1
jax: 0.10.0
libtpu: 0.0.40
codegen_flags: <defaults>
</compile_context>

<pallas_src>
import jax
import jax.numpy as jnp
from jax import lax
from jax.experimental import pallas as pl
from jax.experimental.pallas import tpu as pltpu


def esn_kernel(x_ref, w1_ref, b1_ref, w2_ref, b2_ref, w3_ref, b3_ref, oT_ref):
    # x_ref: (tm, d) batch-major tile (batch on sublanes, d=32 on lanes).
    # All weights are tiny and resident; the kernel is HBM-read / VPU-EUP bound.
    x = x_ref[...]
    # Layer 1: contract the feature dim of both operands -> h1^T (25, tm),
    # i.e. the transpose happens inside the MXU, not as an XLA pass over HBM.
    h1 = jnp.tanh(
        lax.dot_general(
            w1_ref[...], x,
            dimension_numbers=(((1,), (1,)), ((), ())),
            preferred_element_type=jnp.float32,
        )
        + b1_ref[...]
    )                                                             # (25, tm)
    h2 = jnp.tanh(
        jnp.dot(w2_ref[...], h1, preferred_element_type=jnp.float32) + b2_ref[...]
    )                                                             # (25, tm)
    h3 = jnp.tanh(
        jnp.dot(w3_ref[...], h2, preferred_element_type=jnp.float32) + b3_ref[...]
    )                                                             # (d_out, tm), lane-dense
    oT_ref[...] = h3.astype(oT_ref.dtype)


def _round_up(n, m):
    return ((n + m - 1) // m) * m


def esn_forward(x, params, *, tm=16384, min_grid_steps=2):
    """x: [N, d] float32.

    params (torch nn.Linear layout):
      w1 [25, d],  b1 [25, 1]
      w2 [25, 25], b2 [25, 1]
      w3 [d_out, 25], b3 [d_out, 1]
    Returns [N, d_out] float32.
    """
    N, d = x.shape
    h = params["w1"].shape[0]          # 25
    d_out = params["w3"].shape[0]      # 1
    assert tm % 128 == 0, "batch tile must be a multiple of the 128-lane axis"

    # Pad the batch only to the next multiple of 128 (lane alignment); padded
    # rows are zeros, produce independent garbage outputs, and are sliced off.
    N_pad = _round_up(N, 128)
    if N_pad != N:
        x = jnp.pad(x, ((0, N_pad - N), (0, 0)))

    # Effective tile: as large as possible (amortize ~0.35us/step pipeline
    # overhead) but capped so the grid keeps >= min_grid_steps steps so v7x's
    # two TensorCores both get work under dimension_semantics=("parallel",).
    per_step_cap = _round_up(pl.cdiv(N_pad, min_grid_steps), 128)
    tm_eff = max(128, min(tm, per_step_cap))
    grid = (pl.cdiv(N_pad, tm_eff),)

    # VMEM budget (f32), tm=16384: x tile 2 MiB (x2 dbl-buf) + out 64 KiB (x2)
    # + weights (<5 KiB) + ~2x 2 MiB intermediates -> ~8.5 MiB, well under the
    # 32 MiB scoped default on v5e/v6e/v7x.
    outT = pl.pallas_call(
        esn_kernel,
        out_shape=jax.ShapeDtypeStruct((d_out, N_pad), jnp.float32),
        grid_spec=pltpu.PrefetchScalarGridSpec(
            num_scalar_prefetch=0,
            grid=grid,
            in_specs=[
                pl.BlockSpec((tm_eff, d), lambda i: (i, 0)),      # x, batch-major
                pl.BlockSpec((h, d), lambda i: (0, 0)),           # w1 (resident)
                pl.BlockSpec((h, 1), lambda i: (0, 0)),           # b1
                pl.BlockSpec((h, h), lambda i: (0, 0)),           # w2
                pl.BlockSpec((h, 1), lambda i: (0, 0)),           # b2
                pl.BlockSpec((d_out, h), lambda i: (0, 0)),       # w3
                pl.BlockSpec((d_out, 1), lambda i: (0, 0)),       # b3
            ],
            out_specs=pl.BlockSpec((d_out, tm_eff), lambda i: (0, i)),  # lane-dense
        ),
        compiler_params=pltpu.CompilerParams(
            dimension_semantics=("parallel",),   # shard grid steps over v7x's 2 TCs
        ),
    )(x, params["w1"], params["b1"], params["w2"], params["b2"],
      params["w3"], params["b3"])

    # (1, N_pad) -> (N, 1): metadata-only transpose + slice off padded rows.
    return jnp.transpose(outT)[:N, :]


def init_esn_params(key, d, d_out=1, hidden=25):
    """Deterministic init mimicking torch.nn.Linear default U(-1/sqrt(fan_in), +).

    Weights kept in the torch [out, in] layout; biases as column vectors
    [out, 1] so the feature-major kernel broadcasts them across lanes.
    """
    ks = jax.random.split(key, 6)

    def lin(kw, kb, fan_in, fan_out):
        bound = 1.0 / jnp.sqrt(fan_in)
        w = jax.random.uniform(kw, (fan_out, fan_in), jnp.float32, -bound, bound)
        b = jax.random.uniform(kb, (fan_out, 1), jnp.float32, -bound, bound)
        return w, b

    w1, b1 = lin(ks[0], ks[1], d, hidden)
    w2, b2 = lin(ks[2], ks[3], hidden, hidden)
    w3, b3 = lin(ks[4], ks[5], hidden, d_out)
    return {"w1": w1, "b1": b1, "w2": w2, "b2": b2, "w3": w3, "b3": b3}


def esn_reference(x, p):
    # Batch-major reference matching torch: y = x @ W.T + b
    h1 = jnp.tanh(x @ p["w1"].T + p["b1"].T)
    h2 = jnp.tanh(h1 @ p["w2"].T + p["b2"].T)
    return jnp.tanh(h2 @ p["w3"].T + p["b3"].T)


if __name__ == "__main__":
    key = jax.random.PRNGKey(0)
    k_x, k_p, k_x2 = jax.random.split(key, 3)

    N, d, d_out = 256, 32, 1
    x = jax.random.normal(k_x, (N, d), dtype=jnp.float32)
    params = init_esn_params(k_p, d, d_out)

    out = esn_forward(x, params)
    out = jax.block_until_ready(out)

    ref = esn_reference(x, params)
    assert out.shape == (N, d_out)
    assert jnp.allclose(out, ref, atol=1e-5, rtol=1e-5), "mismatch vs reference"

    # Ragged-batch sanity check (N not a multiple of 128).
    x2 = jax.random.normal(k_x2, (200, d), dtype=jnp.float32)
    out2 = jax.block_until_ready(esn_forward(x2, params))
    assert out2.shape == (200, d_out)
    assert jnp.allclose(out2, esn_reference(x2, params), atol=1e-5, rtol=1e-5), \
        "ragged-batch mismatch vs reference"

    print("KERNEL_OK")
</pallas_src>

<mosaic_0001>
module attributes {stable_mosaic.version = 11 : i64} {
  func.func @esn_kernel(%arg0: i32, %arg1: memref<128x32xf32, #tpu.memory_space<vmem>>, %arg2: memref<25x32xf32, #tpu.memory_space<vmem>>, %arg3: memref<25x1xf32, #tpu.memory_space<vmem>>, %arg4: memref<25x25xf32, #tpu.memory_space<vmem>>, %arg5: memref<25x1xf32, #tpu.memory_space<vmem>>, %arg6: memref<1x25xf32, #tpu.memory_space<vmem>>, %arg7: memref<1x1xf32, #tpu.memory_space<vmem>>, %arg8: memref<1x128xf32, #tpu.memory_space<vmem>>) attributes {dimension_semantics = [#tpu.dimension_semantics<parallel>], iteration_bounds = array<i64: 2>, scalar_prefetch = 0 : i64, scratch_operands = 0 : i64, tpu.core_type = #tpu.core_type<tc>, window_params = [{transform_indices = @transform_0, window_bounds = array<i64: 128, 32>}, {pipeline_mode = #tpu.pipeline_mode<synchronous>, transform_indices = @transform_1, window_bounds = array<i64: 25, 32>}, {pipeline_mode = #tpu.pipeline_mode<synchronous>, transform_indices = @transform_2, window_bounds = array<i64: 25, 1>}, {pipeline_mode = #tpu.pipeline_mode<synchronous>, transform_indices = @transform_3, window_bounds = array<i64: 25, 25>}, {pipeline_mode = #tpu.pipeline_mode<synchronous>, transform_indices = @transform_4, window_bounds = array<i64: 25, 1>}, {pipeline_mode = #tpu.pipeline_mode<synchronous>, transform_indices = @transform_5, window_bounds = array<i64: 1, 25>}, {pipeline_mode = #tpu.pipeline_mode<synchronous>, transform_indices = @transform_6, window_bounds = array<i64: 1, 1>}, {transform_indices = @transform_7, window_bounds = array<i64: 1, 128>}]} {
    %c0 = arith.constant 0 : index
    %c0_0 = arith.constant 0 : index
    %0 = vector.load %arg1[%c0, %c0_0] : memref<128x32xf32, #tpu.memory_space<vmem>>, vector<128x32xf32>
    %c0_1 = arith.constant 0 : index
    %c0_2 = arith.constant 0 : index
    %1 = vector.load %arg2[%c0_1, %c0_2] : memref<25x32xf32, #tpu.memory_space<vmem>>, vector<25x32xf32>
    %cst = arith.constant dense<0.000000e+00> : vector<25x128xf32>
    %2 = tpu.matmul %1, %0, %cst {dimension_numbers = #tpu.dot_dimension_numbers<[1], [1], [0], [0], [0, 0, 1, 0], [], []>} : vector<25x32xf32>, vector<128x32xf32>, vector<25x128xf32> -> vector<25x128xf32>
    %c0_3 = arith.constant 0 : index
    %c0_4 = arith.constant 0 : index
    %3 = vector.load %arg3[%c0_3, %c0_4] : memref<25x1xf32, #tpu.memory_space<vmem>>, vector<25x1xf32>
    %4 = vector.broadcast %3 : vector<25x1xf32> to vector<25x128xf32>
    %5 = arith.addf %2, %4 : vector<25x128xf32>
    %6 = math.tanh %5 : vector<25x128xf32>
    %c0_5 = arith.constant 0 : index
    %c0_6 = arith.constant 0 : index
    %7 = vector.load %arg4[%c0_5, %c0_6] : memref<25x25xf32, #tpu.memory_space<vmem>>, vector<25x25xf32>
    %cst_7 = arith.constant dense<0.000000e+00> : vector<25x128xf32>
    %8 = tpu.matmul %7, %6, %cst_7 {dimension_numbers = #tpu.dot_dimension_numbers<[1], [0], [0], [1], [0, 0, 1, 1], [], []>} : vector<25x25xf32>, vector<25x128xf32>, vector<25x128xf32> -> vector<25x128xf32>
    %c0_8 = arith.constant 0 : index
    %c0_9 = arith.constant 0 : index
    %9 = vector.load %arg5[%c0_8, %c0_9] : memref<25x1xf32, #tpu.memory_space<vmem>>, vector<25x1xf32>
    %10 = vector.broadcast %9 : vector<25x1xf32> to vector<25x128xf32>
    %11 = arith.addf %8, %10 : vector<25x128xf32>
    %12 = math.tanh %11 : vector<25x128xf32>
    %c0_10 = arith.constant 0 : index
    %c0_11 = arith.constant 0 : index
    %13 = vector.load %arg6[%c0_10, %c0_11] : memref<1x25xf32, #tpu.memory_space<vmem>>, vector<1x25xf32>
    %cst_12 = arith.constant dense<0.000000e+00> : vector<1x128xf32>
    %14 = tpu.matmul %13, %12, %cst_12 {dimension_numbers = #tpu.dot_dimension_numbers<[1], [0], [0], [1], [0, 0, 1, 1], [], []>} : vector<1x25xf32>, vector<25x128xf32>, vector<1x128xf32> -> vector<1x128xf32>
    %c0_13 = arith.constant 0 : index
    %c0_14 = arith.constant 0 : index
    %15 = vector.load %arg7[%c0_13, %c0_14] : memref<1x1xf32, #tpu.memory_space<vmem>>, vector<1x1xf32>
    %16 = vector.broadcast %15 : vector<1x1xf32> to vector<1x128xf32>
    %17 = arith.addf %14, %16 : vector<1x128xf32>
    %18 = math.tanh %17 : vector<1x128xf32>
    %c0_15 = arith.constant 0 : index
    %c0_16 = arith.constant 0 : index
    %19 = vector.load %arg8[%c0_15, %c0_16] : memref<1x128xf32, #tpu.memory_space<vmem>>, vector<1x128xf32>
    tpu.vector_store %arg8[%c0_15, %c0_16], %18 {strides = array<i32>} : memref<1x128xf32, #tpu.memory_space<vmem>>, vector<1x128xf32>,
    return
  }
  func.func @transform_0(%arg0: i32) -> (i32, i32) {
    %c0_i32 = arith.constant 0 : i32
    %c0_i32_0 = arith.constant 0 : i32
    return %arg0, %c0_i32 : i32, i32
  }
  func.func @transform_1(%arg0: i32) -> (i32, i32) {
    %c0_i32 = arith.constant 0 : i32
    %c0_i32_0 = arith.constant 0 : i32
    %c0_i32_1 = arith.constant 0 : i32
    return %c0_i32, %c0_i32_0 : i32, i32
  }
  func.func @transform_2(%arg0: i32) -> (i32, i32) {
    %c0_i32 = arith.constant 0 : i32
    %c0_i32_0 = arith.constant 0 : i32
    %c0_i32_1 = arith.constant 0 : i32
    return %c0_i32, %c0_i32_0 : i32, i32
  }
  func.func @transform_3(%arg0: i32) -> (i32, i32) {
    %c0_i32 = arith.constant 0 : i32
    %c0_i32_0 = arith.constant 0 : i32
    %c0_i32_1 = arith.constant 0 : i32
    return %c0_i32, %c0_i32_0 : i32, i32
  }
  func.func @transform_4(%arg0: i32) -> (i32, i32) {
    %c0_i32 = arith.constant 0 : i32
    %c0_i32_0 = arith.constant 0 : i32
    %c0_i32_1 = arith.constant 0 : i32
    return %c0_i32, %c0_i32_0 : i32, i32
  }
  func.func @transform_5(%arg0: i32) -> (i32, i32) {
    %c0_i32 = arith.constant 0 : i32
    %c0_i32_0 = arith.constant 0 : i32
    %c0_i32_1 = arith.constant 0 : i32
    return %c0_i32, %c0_i32_0 : i32, i32
  }
  func.func @transform_6(%arg0: i32) -> (i32, i32) {
    %c0_i32 = arith.constant 0 : i32
    %c0_i32_0 = arith.constant 0 : i32
    %c0_i32_1 = arith.constant 0 : i32
    return %c0_i32, %c0_i32_0 : i32, i32
  }
  func.func @transform_7(%arg0: i32) -> (i32, i32) {
    %c0_i32 = arith.constant 0 : i32
    %c0_i32_0 = arith.constant 0 : i32
    return %c0_i32, %arg0 : i32, i32
  }
}

</mosaic_0001>

<llo_original>
// kernel: tpu_custom_call.1
$region0: #{tpu_custom_call.1}
  #allocation0 [shape = 'u32[]', space=smem, size = 0x4, offset = 0x4, fixed_abs, tag = 'smem constant byte address 0x4 - core index']
  #allocation1 [shape = 'u32[144,128]{1,0:T(1,128)}', space=vmem, size = 0x12000, scoped, tag = 'internal scratch']
  #allocation2 [shape = 'f32[1,1]{1,0:T(1,128)S(1)}', space=vmem, size = 0x200, scoped, tag = 'scoped memory for tpu_custom_call.1']
  %s0 = inlined_call_operand.vmem [shape: f32[256,32], index: 0, kind: input, shape index: {}]
  %s1 = inlined_call_operand.vmem [shape: f32[25,32], index: 1, kind: input, shape index: {}]
  %s2 = inlined_call_operand.vmem [shape: f32[25,1], index: 2, kind: input, shape index: {}]
  %s3 = inlined_call_operand.vmem [shape: f32[25,25], index: 3, kind: input, shape index: {}]
  %s4 = inlined_call_operand.vmem [shape: f32[25,1], index: 4, kind: input, shape index: {}]
  %s5 = inlined_call_operand.vmem [shape: f32[1,25], index: 5, kind: input, shape index: {}]
  %s6 = inlined_call_operand.<no memory space> [shape: f32[1,1], index: 6, kind: input, shape index: {}]
  %s7 = inlined_call_operand.hbm [shape: f32[1,256], index: 7, kind: output, shape index: {}]
  %s8 = sld [smem:[#allocation0]]
  $region61: #{tpu_custom_call.1} parent=0
    _
  %s10 = ssub.s32 1, %s8
  %s11 = scalar_select 0, %s10, %s8
  %v12 = vstv %s6
  %13 = vst [vmem:[#allocation2] sm:$0x1] %v12
  $region1: #{tpu_custom_call.1} parent=0
    #allocation3 [shape = 'u8[1024]{0}', space=vmem, size = 0x400, scoped, tag = 'output window, operand 0']
    #allocation4 [shape = 's32[2]{0}', space=sflag, size = 0x8, scoped, tag = 'scoped memory for tpu_custom_call.1']
    %14 = vsyncpa [#allocation4], 0
    %s15 = scalar_lea.sflag [#allocation4], 1
    %16 = vsyncpa %s15, 0
    loop: start=0, step=1, limit=4
    $region2: #{tpu_custom_call.1} parent=1 // loop_pre_header
      _
    $region3: #{tpu_custom_call.1} parent=1 // loop_header
      %s18 = sphi 0, %s22
      %p19 = scmp.ge.s32.totalorder %s18, 4
      %s28 = sphi 0, %s30
      %s31 = sphi 0, %s28
      %s32 = sphi 0, %s31
      %s48 = sphi 0, %s32
      %s52 = sphi 0, %s52
      %s54 = sphi 0, %s52
      %s55 = sphi 0, %s54
      %s69 = sphi 0, %s55
      %s73 = sphi 0, %s73
      %s75 = sphi 0, %s73
      %s76 = sphi 0, %s75
      %s90 = sphi 0, %s76
      %s94 = sphi 0, %s94
      %s96 = sphi 0, %s94
      %s97 = sphi 0, %s96
      %s111 = sphi 0, %s97
      %s115 = sphi 0, %s115
      %s117 = sphi 0, %s115
      %s118 = sphi 0, %s117
      %s132 = sphi 0, %s118
      %s136 = sphi 0, %s136
      %s138 = sphi 0, %s136
      %s139 = sphi 0, %s138
      %s153 = sphi 0, %s139
      %s157 = sphi 0, %s157
      %s159 = sphi 0, %s157
      %s160 = sphi 0, %s159
      %s174 = sphi 0, %s160
      %s180 = sphi 0, %s182
      %s183 = sphi 0, %s180
      %s184 = sphi 0, %s183
      %s200 = sphi 0, %s184
    $region4: #{tpu_custom_call.1} parent=1 // loop_header_branch
      %21 = sbr.rel (%p19) target = $region8
    $region5: #{tpu_custom_call.1} parent=1 // loop_body
      %s23 = ssub.s32 %s18, 1
      %s24 = ssub.s32 %s18, 2
      %s25 = sadd.s32 %s18, 1
      %s26 = ssub.s32 %s18, %s25
      %p27 = scmp.eq.s32.totalorder %s26, 0
      %s29 = sadd.s32 %s28, 1
      %s30 = scalar_select %p27, %s28, %s29
      %p33 = pneg %p27
      %p34 = scmp.eq.s32.totalorder %s18, 1
      %p35 = por %p33, %p34
      %p36 = scmp.ne.s32.totalorder %s28, %s31
      %p37 = scmp.eq.s32.totalorder %s18, 0
      %p38 = por %p36, %p37
      %p39 = scmp.ne.s32.totalorder %s28, %s31
      %p40 = scmp.eq.s32.totalorder %s23, 1
      %p41 = por %p39, %p40
      %p42 = scmp.ne.s32.totalorder %s31, %s32
      %p43 = scmp.eq.s32.totalorder %s23, 0
      %p44 = por %p42, %p43
      %p45 = scmp.ne.s32.totalorder %s31, %s32
      %p46 = scmp.eq.s32.totalorder %s24, 1
      %p47 = por %p45, %p46
      %p49 = scmp.ne.s32.totalorder %s32, %s48
      %p50 = scmp.eq.s32.totalorder %s24, 0
      %p51 = por %p49, %p50
      %s53 = sadd.s32 %s52, 1
      %p56 = scmp.eq.s32.totalorder %s18, 1
      %p57 = scmp.ne.s32.totalorder %s52, %s54
      %p58 = scmp.eq.s32.totalorder %s18, 0
      %p59 = por %p57, %p58
      %p60 = scmp.ne.s32.totalorder %s52, %s54
      %p61 = scmp.eq.s32.totalorder %s23, 1
      %p62 = por %p60, %p61
      %p63 = scmp.ne.s32.totalorder %s54, %s55
      %p64 = scmp.eq.s32.totalorder %s23, 0
      %p65 = por %p63, %p64
      %p66 = scmp.ne.s32.totalorder %s54, %s55
      %p67 = scmp.eq.s32.totalorder %s24, 1
      %p68 = por %p66, %p67
      %p70 = scmp.ne.s32.totalorder %s55, %s69
      %p71 = scmp.eq.s32.totalorder %s24, 0
      %p72 = por %p70, %p71
      %s74 = sadd.s32 %s73, 1
      %p77 = scmp.eq.s32.totalorder %s18, 1
      %p78 = scmp.ne.s32.totalorder %s73, %s75
      %p79 = scmp.eq.s32.totalorder %s18, 0
      %p80 = por %p78, %p79
      %p81 = scmp.ne.s32.totalorder %s73, %s75
      %p82 = scmp.eq.s32.totalorder %s23, 1
      %p83 = por %p81, %p82
      %p84 = scmp.ne.s32.totalorder %s75, %s76
      %p85 = scmp.eq.s32.totalorder %s23, 0
      %p86 = por %p84, %p85
      %p87 = scmp.ne.s32.totalorder %s75, %s76
      %p88 = scmp.eq.s32.totalorder %s24, 1
      %p89 = por %p87, %p88
      %p91 = scmp.ne.s32.totalorder %s76, %s90
      %p92 = scmp.eq.s32.totalorder %s24, 0
      %p93 = por %p91, %p92
      %s95 = sadd.s32 %s94, 1
      %p98 = scmp.eq.s32.totalorder %s18, 1
      %p99 = scmp.ne.s32.totalorder %s94, %s96
      %p100 = scmp.eq.s32.totalorder %s18, 0
      %p101 = por %p99, %p100
      %p102 = scmp.ne.s32.totalorder %s94, %s96
      %p103 = scmp.eq.s32.totalorder %s23, 1
      %p104 = por %p102, %p103
      %p105 = scmp.ne.s32.totalorder %s96, %s97
      %p106 = scmp.eq.s32.totalorder %s23, 0
      %p107 = por %p105, %p106
      %p108 = scmp.ne.s32.totalorder %s96, %s97
      %p109 = scmp.eq.s32.totalorder %s24, 1
      %p110 = por %p108, %p109
      %p112 = scmp.ne.s32.totalorder %s97, %s111
      %p113 = scmp.eq.s32.totalorder %s24, 0
      %p114 = por %p112, %p113
      %s116 = sadd.s32 %s115, 1
      %p119 = scmp.eq.s32.totalorder %s18, 1
      %p120 = scmp.ne.s32.totalorder %s115, %s117
      %p121 = scmp.eq.s32.totalorder %s18, 0
      %p122 = por %p120, %p121
      %p123 = scmp.ne.s32.totalorder %s115, %s117
      %p124 = scmp.eq.s32.totalorder %s23, 1
      %p125 = por %p123, %p124
      %p126 = scmp.ne.s32.totalorder %s117, %s118
      %p127 = scmp.eq.s32.totalorder %s23, 0
      %p128 = por %p126, %p127
      %p129 = scmp.ne.s32.totalorder %s117, %s118
      %p130 = scmp.eq.s32.totalorder %s24, 1
      %p131 = por %p129, %p130
      %p133 = scmp.ne.s32.totalorder %s118, %s132
      %p134 = scmp.eq.s32.totalorder %s24, 0
      %p135 = por %p133, %p134
      %s137 = sadd.s32 %s136, 1
      %p140 = scmp.eq.s32.totalorder %s18, 1
      %p141 = scmp.ne.s32.totalorder %s136, %s138
      %p142 = scmp.eq.s32.totalorder %s18, 0
      %p143 = por %p141, %p142
      %p144 = scmp.ne.s32.totalorder %s136, %s138
      %p145 = scmp.eq.s32.totalorder %s23, 1
      %p146 = por %p144, %p145
      %p147 = scmp.ne.s32.totalorder %s138, %s139
      %p148 = scmp.eq.s32.totalorder %s23, 0
      %p149 = por %p147, %p148
      %p150 = scmp.ne.s32.totalorder %s138, %s139
      %p151 = scmp.eq.s32.totalorder %s24, 1
      %p152 = por %p150, %p151
      %p154 = scmp.ne.s32.totalorder %s139, %s153
      %p155 = scmp.eq.s32.totalorder %s24, 0
      %p156 = por %p154, %p155
      %s158 = sadd.s32 %s157, 1
      %p161 = scmp.eq.s32.totalorder %s18, 1
      %p162 = scmp.ne.s32.totalorder %s157, %s159
      %p163 = scmp.eq.s32.totalorder %s18, 0
      %p164 = por %p162, %p163
      %p165 = scmp.ne.s32.totalorder %s157, %s159
      %p166 = scmp.eq.s32.totalorder %s23, 1
      %p167 = por %p165, %p166
      %p168 = scmp.ne.s32.totalorder %s159, %s160
      %p169 = scmp.eq.s32.totalorder %s23, 0
      %p170 = por %p168, %p169
      %p171 = scmp.ne.s32.totalorder %s159, %s160
      %p172 = scmp.eq.s32.totalorder %s24, 1
      %p173 = por %p171, %p172
      %p175 = scmp.ne.s32.totalorder %s160, %s174
      %p176 = scmp.eq.s32.totalorder %s24, 0
      %p177 = por %p175, %p176
      %s178 = ssub.s32 %s18, %s25
      %p179 = scmp.eq.s32.totalorder %s178, 0
      %s181 = sadd.s32 %s180, 1
      %s182 = scalar_select %p179, %s180, %s181
      %p185 = pneg %p179
      %p186 = scmp.eq.s32.totalorder %s18, 1
      %p187 = por %p185, %p186
      %p188 = scmp.ne.s32.totalorder %s180, %s183
      %p189 = scmp.eq.s32.totalorder %s18, 0
      %p190 = por %p188, %p189
      %p191 = scmp.ne.s32.totalorder %s180, %s183
      %p192 = scmp.eq.s32.totalorder %s23, 1
      %p193 = por %p191, %p192
      %p194 = scmp.ne.s32.totalorder %s183, %s184
      %p195 = scmp.eq.s32.totalorder %s23, 0
      %p196 = por %p194, %p195
      %p197 = scmp.ne.s32.totalorder %s183, %s184
      %p198 = scmp.eq.s32.totalorder %s24, 1
      %p199 = por %p197, %p198
      %p201 = scmp.ne.s32.totalorder %s184, %s200
      %p202 = scmp.eq.s32.totalorder %s24, 0
      %p203 = por %p201, %p202
      %p204 = scmp.le.s32.totalorder 1, %s18
      %p205 = scmp.lt.s32.totalorder %s18, 3
      %p206 = pnand %p204, %p205
      %p207 = pneg %p206
      // Predicated region
      $region9: #{tpu_custom_call.1} parent=5 // pred_check
        _
      $region10: #{tpu_custom_call.1} parent=5 // pred_check_branch
        %209 = sbr.rel (%p206) target = $region12
      $region11: #{tpu_custom_call.1} parent=5 // pred_region
        %s210 = ssub.s32 %s18, 1
        // Predicated region
        $region13: #{tpu_custom_call.1} parent=11 // pred_check
          %p211 = pneg %p65
        $region14: #{tpu_custom_call.1} parent=11 // pred_check_branch
          %213 = sbr.rel (%p211) target = $region16
        $region15: #{tpu_custom_call.1} parent=11 // pred_region
          _
        $region16: #{tpu_custom_call.1} parent=11 // pred_fallthru
          _
        // Predicated region
        $region17: #{tpu_custom_call.1} parent=11 // pred_check
          %p214 = pneg %p86
        $region18: #{tpu_custom_call.1} parent=11 // pred_check_branch
          %216 = sbr.rel (%p214) target = $region20
        $region19: #{tpu_custom_call.1} parent=11 // pred_region
          _
        $region20: #{tpu_custom_call.1} parent=11 // pred_fallthru
          _
        // Predicated region
        $region21: #{tpu_custom_call.1} parent=11 // pred_check
          %p217 = pneg %p107
        $region22: #{tpu_custom_call.1} parent=11 // pred_check_branch
          %219 = sbr.rel (%p217) target = $region24
        $region23: #{tpu_custom_call.1} parent=11 // pred_region
          _
        $region24: #{tpu_custom_call.1} parent=11 // pred_fallthru
          _
        // Predicated region
        $region25: #{tpu_custom_call.1} parent=11 // pred_check
          %p220 = pneg %p128
        $region26: #{tpu_custom_call.1} parent=11 // pred_check_branch
          %222 = sbr.rel (%p220) target = $region28
        $region27: #{tpu_custom_call.1} parent=11 // pred_region
          _
        $region28: #{tpu_custom_call.1} parent=11 // pred_fallthru
          _
        // Predicated region
        $region29: #{tpu_custom_call.1} parent=11 // pred_check
          %p223 = pneg %p149
        $region30: #{tpu_custom_call.1} parent=11 // pred_check_branch
          %225 = sbr.rel (%p223) target = $region32
        $region31: #{tpu_custom_call.1} parent=11 // pred_region
          _
        $region32: #{tpu_custom_call.1} parent=11 // pred_fallthru
          _
        // Predicated region
        $region33: #{tpu_custom_call.1} parent=11 // pred_check
          %p226 = pneg %p170
        $region34: #{tpu_custom_call.1} parent=11 // pred_check_branch
          %228 = sbr.rel (%p226) target = $region36
        $region35: #{tpu_custom_call.1} parent=11 // pred_region
          _
        $region36: #{tpu_custom_call.1} parent=11 // pred_fallthru
          _
      $region12: #{tpu_custom_call.1} parent=5 // pred_fallthru
        _
      %p229 = scmp.lt.s32.totalorder %s18, 2
      // Predicated region
      $region37: #{tpu_custom_call.1} parent=5 // pred_check
        %p230 = pneg %p229
      $region38: #{tpu_custom_call.1} parent=5 // pred_check_branch
        %232 = sbr.rel (%p230) target = $region40
      $region39: #{tpu_custom_call.1} parent=5 // pred_region
        // Predicated region
        $region41: #{tpu_custom_call.1} parent=39 // pred_check
          %p233 = pneg %p38
        $region42: #{tpu_custom_call.1} parent=39 // pred_check_branch
          %235 = sbr.rel (%p233) target = $region44
        $region43: #{tpu_custom_call.1} parent=39 // pred_region
          %s236 = smul.u32 16, %s18
          %p237 = scmp.lt.s32.totalorder %s236, 31
          %s238 = scalar_select %p237, %s236, 31
          %s239 = smul.addr %s238, 8
          %s240 = scalar_lea.vmem %s0, %s239
          %s241 = smul.u32 16, %s18
        $region44: #{tpu_custom_call.1} parent=39 // pred_fallthru
          _
      $region40: #{tpu_custom_call.1} parent=5 // pred_fallthru
        _
      %p242 = scmp.le.s32.totalorder 1, %s18
      %p243 = scmp.lt.s32.totalorder %s18, 3
      %p244 = pnand %p242, %p243
      %p245 = pneg %p244
      // Predicated region
      $region45: #{tpu_custom_call.1} parent=5 // pred_check
        _
      $region46: #{tpu_custom_call.1} parent=5 // pred_check_branch
        %247 = sbr.rel (%p244) target = $region48
      $region47: #{tpu_custom_call.1} parent=5 // pred_region
        %s248 = ssub.s32 %s18, 1
        %s249 = smul.u32 16, %s23
        %p250 = scmp.lt.s32.totalorder %s249, 31
        %s251 = scalar_select %p250, %s249, 31
        %s252 = smul.addr %s251, 8
        %s253 = scalar_lea.vmem %s0, %s252
        %p254 = pneg %p44
        %p255 = pneg %p41
        %p256 = pneg %p65
        %p257 = pneg %p62
        %p258 = pneg %p86
        %p259 = pneg %p83
        %p260 = pneg %p107
        %p261 = pneg %p104
        %p262 = pneg %p128
        %p263 = pneg %p125
        %p264 = pneg %p149
        %p265 = pneg %p146
        %p266 = pneg %p170
        %p267 = pneg %p167
        %p268 = pneg %p196
        %p269 = pneg %p193
        %s270 = sand.u32 %s183, 1
        %s271 = scalar_lea.sflag [#allocation4], %s270
        %s272 = sand.u32 %s183, 1
        %s273 = scalar_lea.vmem [#allocation3], %s272
        %s274 = smul.u32 16, %s23
        %p275 = scmp.lt.s32.totalorder %s274, 31
        %s276 = scalar_select %p275, %s274, 31
        %s277 = smul.addr %s276, 8
        %s278 = scalar_lea.vmem %s0, %s277
        %s279 = smul.u32 16, %s23
        %v280 = vld [vmem:[%s278] sm:$0xff]
        %v281 = vld [vmem:[%s278 + $0x8] sm:$0xff]
        %v282 = vld [vmem:[%s278 + $0x10] sm:$0xff]
        %v283 = vld [vmem:[%s278 + $0x18] sm:$0xff]
        %v284 = vld [vmem:[%s278 + $0x20] sm:$0xff]
        %v285 = vld [vmem:[%s278 + $0x28] sm:$0xff]
        %v286 = vld [vmem:[%s278 + $0x30] sm:$0xff]
        %v287 = vld [vmem:[%s278 + $0x38] sm:$0xff]
        %v288 = vld [vmem:[%s278 + $0x40] sm:$0xff]
        %v289 = vld [vmem:[%s278 + $0x48] sm:$0xff]
        %v290 = vld [vmem:[%s278 + $0x50] sm:$0xff]
        %v291 = vld [vmem:[%s278 + $0x58] sm:$0xff]
        %v292 = vld [vmem:[%s278 + $0x60] sm:$0xff]
        %v293 = vld [vmem:[%s278 + $0x68] sm:$0xff]
        %v294 = vld [vmem:[%s278 + $0x70] sm:$0xff]
        %v295 = vld [vmem:[%s278 + $0x78] sm:$0xff]
        %v296 = vld [vmem:[%s1] sm:$0xff]
        %v297 = vld [vmem:[%s1 + $0x8] sm:$0xff]
        %v298 = vld [vmem:[%s1 + $0x10] sm:$0xff]
        %v299 = vld [vmem:[%s1 + $0x18] sm:$0x1]
        %v300 = vld [vmem:[%s2] sm:$0xff]
        %v301 = vld [vmem:[%s2 + $0x8] sm:$0xff]
        %v302 = vld [vmem:[%s2 + $0x10] sm:$0xff]
        %v303 = vld [vmem:[%s2 + $0x18] sm:$0x1]
        %305 = vset.pattern.permute.xlu0 0
        %306 = vperm.xlu0 %305, %v300
        %v307 = vpop.permute.xlu0 %306
        %310 = vset.pattern.permute.xlu0 0
        %311 = vperm.xlu0 %310, %v301
        %v312 = vpop.permute.xlu0 %311
        %315 = vset.pattern.permute.xlu0 0
        %316 = vperm.xlu0 %315, %v302
        %v317 = vpop.permute.xlu0 %316
        %320 = vset.pattern.permute.xlu0 0
        %321 = vperm.xlu0 %320, %v303
        %v322 = vpop.permute.xlu0 %321
        %vm324 = vcmask 261120
        %v326 = vsel %vm324, %v296, 0
        %v329 = vsel %vm324, %v297, 0
        %v332 = vsel %vm324, %v298, 0
        %v335 = vsel %vm324, %v299, 0
        %v338 = vsel %vm324, %v280, 0
        %v341 = vsel %vm324, %v281, 0
        %v344 = vsel %vm324, %v282, 0
        %v347 = vsel %vm324, %v283, 0
        %v350 = vsel %vm324, %v284, 0
        %v353 = vsel %vm324, %v285, 0
        %v356 = vsel %vm324, %v286, 0
        %v359 = vsel %vm324, %v287, 0
        %v362 = vsel %vm324, %v288, 0
        %v365 = vsel %vm324, %v289, 0
        %v368 = vsel %vm324, %v290, 0
        %v371 = vsel %vm324, %v291, 0
        %v374 = vsel %vm324, %v292, 0
        %v377 = vsel %vm324, %v293, 0
        %v380 = vsel %vm324, %v294, 0
        %v383 = vsel %vm324, %v295, 0
        %385 = vmatprep.subr.mxu0 0.0
        %386 = vmatpush1.xpose.msra.mxu0 %v338
        %387 = vmatprep.subr.mxu0 0.0
        %388 = vmatpush1.xpose.msra.mxu0 %v341
        %389 = vmatprep.subr.mxu0 0.0
        %390 = vmatpush1.xpose.msra.mxu0 %v344
        %391 = vmatprep.subr.mxu0 0.0
        %392 = vmatpush1.xpose.msra.mxu0 %v347
        %393 = vmatprep.subr.mxu0 0.0
        %394 = vmatpush1.xpose.msra.mxu0 %v350
        %395 = vmatprep.subr.mxu0 0.0
        %396 = vmatpush1.xpose.msra.mxu0 %v353
        %397 = vmatprep.subr.mxu0 0.0
        %398 = vmatpush1.xpose.msra.mxu0 %v356
        %399 = vmatprep.subr.mxu0 0.0
        %400 = vmatpush1.xpose.msra.mxu0 %v359
        %401 = vmatprep.subr.mxu0 0.0
        %402 = vmatpush1.xpose.msra.mxu0 %v362
        %403 = vmatprep.subr.mxu0 0.0
        %404 = vmatpush1.xpose.msra.mxu0 %v365
        %405 = vmatprep.subr.mxu0 0.0
        %406 = vmatpush1.xpose.msra.mxu0 %v368
        %407 = vmatprep.subr.mxu0 0.0
        %408 = vmatpush1.xpose.msra.mxu0 %v371
        %409 = vmatprep.subr.mxu0 0.0
        %410 = vmatpush1.xpose.msra.mxu0 %v374
        %411 = vmatprep.subr.mxu0 0.0
        %412 = vmatpush1.xpose.msra.mxu0 %v377
        %413 = vmatprep.subr.mxu0 0.0
        %414 = vmatpush1.xpose.msra.mxu0 %v380
        %415 = vmatprep.subr.mxu0 0.0
        %416 = vmatpush1.xpose.msra.mxu0 %v383
        %417 = vmatprep.subr.mxu0 0.0
        %418 = vmatpush1.xpose.msra.mxu0 0.0
        %419 = vmatprep.subr.mxu0 0.0
        %420 = vmatpush1.xpose.msra.mxu0 0.0
        %421 = vmatprep.subr.mxu0 0.0
        %422 = vmatpush1.xpose.msra.mxu0 0.0
        %423 = vmatprep.subr.mxu0 0.0
        %424 = vmatpush1.xpose.msra.mxu0 0.0
        %425 = vmatprep.subr.mxu0 0.0
        %426 = vmatpush1.xpose.msra.mxu0 0.0
        %427 = vmatprep.subr.mxu0 0.0
        %428 = vmatpush1.xpose.msra.mxu0 0.0
        %429 = vmatprep.subr.mxu0 0.0
        %430 = vmatpush1.xpose.msra.mxu0 0.0
        %431 = vmatprep.subr.mxu0 0.0
        %432 = vmatpush1.xpose.msra.mxu0 0.0
        %433 = vmatprep.subr.mxu0 0.0
        %434 = vmatpush1.xpose.msra.mxu0 0.0
        %435 = vmatprep.subr.mxu0 0.0
        %436 = vmatpush1.xpose.msra.mxu0 0.0
        %437 = vmatprep.subr.mxu0 0.0
        %438 = vmatpush1.xpose.msra.mxu0 0.0
        %439 = vmatprep.subr.mxu0 0.0
        %440 = vmatpush1.xpose.msra.mxu0 0.0
        %441 = vmatprep.subr.mxu0 0.0
        %442 = vmatpush1.xpose.msra.mxu0 0.0
        %443 = vmatprep.subr.mxu0 0.0
        %444 = vmatpush1.xpose.msra.mxu0 0.0
        %445 = vmatprep.subr.mxu0 0.0
        %446 = vmatpush1.xpose.msra.mxu0 0.0
        %447 = vmatprep.subr.mxu0 0.0
        %448 = vmatpush1.xpose.msra.mxu0 0.0
        %449 = vmatprep.mubr.f32.mxu0 0.0
        %450 = vmatmul.mubr.f32.gmra.mrb[0].mxu0 %v326
        %v451 = vpop.f32.mrb[0].mxu0
        %v452 = vadd.f32 %v307, %v451
        %v453 = vpop.f32.mrb[0].mxu0
        %454 = vmatprep.mubr.f32.mxu0 0.0
        %455 = vmatmul.mubr.f32.gmra.mrb[0].mxu0 %v329
        %v456 = vpop.f32.mrb[0].mxu0
        %v457 = vadd.f32 %v312, %v456
        %v458 = vpop.f32.mrb[0].mxu0
        %459 = vmatprep.mubr.f32.mxu0 0.0
        %460 = vmatmul.mubr.f32.gmra.mrb[0].mxu0 %v332
        %v461 = vpop.f32.mrb[0].mxu0
        %v462 = vadd.f32 %v317, %v461
        %v463 = vpop.f32.mrb[0].mxu0
        %464 = vmatprep.mubr.f32.mxu0 0.0
        %465 = vmatmul.mubr.f32.gmra.mrb[0].mxu0 %v335
        %v466 = vpop.f32.mrb[0].mxu0
        %v467 = vadd.f32 %v322, %v466
        %v468 = vpop.f32.mrb[0].mxu0
        %469 = vdwg.mxu0
        %v470 = vtanh.pop %v452
        %v471 = vtanh.pop %v457
        %v472 = vtanh.pop %v462
        %v473 = vtanh.pop %v467
        %v474 = vld [vmem:[%s3] sm:$0xff]
        %v475 = vld [vmem:[%s3 + $0x8] sm:$0xff]
        %v476 = vld [vmem:[%s3 + $0x10] sm:$0xff]
        %v477 = vld [vmem:[%s3 + $0x18] sm:$0x1]
        %v478 = vld [vmem:[%s4] sm:$0xff]
        %v479 = vld [vmem:[%s4 + $0x8] sm:$0xff]
        %v480 = vld [vmem:[%s4 + $0x10] sm:$0xff]
        %v481 = vld [vmem:[%s4 + $0x18] sm:$0x1]
        %483 = vset.pattern.permute.xlu0 0
        %484 = vperm.xlu0 %483, %v478
        %v485 = vpop.permute.xlu0 %484
        %488 = vset.pattern.permute.xlu0 0
        %489 = vperm.xlu0 %488, %v479
        %v490 = vpop.permute.xlu0 %489
        %493 = vset.pattern.permute.xlu0 0
        %494 = vperm.xlu0 %493, %v480
        %v495 = vpop.permute.xlu0 %494
        %498 = vset.pattern.permute.xlu0 0
        %499 = vperm.xlu0 %498, %v481
        %v500 = vpop.permute.xlu0 %499
        %vm502 = vcmask 203776
        %v504 = vsel %vm502, %v474, 0
        %v507 = vsel %vm502, %v475, 0
        %v510 = vsel %vm502, %v476, 0
        %v513 = vsel %vm502, %v477, 0
        %vm515 = vcmask 1040384
        %v517 = vsel %vm515, %v473, 0
        %519 = vmatprep.subr.mxu0 0.0
        %520 = vmatpush1.msra.mxu0 %v470
        %521 = vmatprep.subr.mxu0 0.0
        %522 = vmatpush1.msra.mxu0 %v471
        %523 = vmatprep.subr.mxu0 0.0
        %524 = vmatpush1.msra.mxu0 %v472
        %525 = vmatprep.subr.mxu0 0.0
        %526 = vmatpush1.msra.mxu0 %v517
        %527 = vmatprep.subr.mxu0 0.0
        %528 = vmatpush1.msra.mxu0 0.0
        %529 = vmatprep.subr.mxu0 0.0
        %530 = vmatpush1.msra.mxu0 0.0
        %531 = vmatprep.subr.mxu0 0.0
        %532 = vmatpush1.msra.mxu0 0.0
        %533 = vmatprep.subr.mxu0 0.0
        %534 = vmatpush1.msra.mxu0 0.0
        %535 = vmatprep.subr.mxu0 0.0
        %536 = vmatpush1.msra.mxu0 0.0
        %537 = vmatprep.subr.mxu0 0.0
        %538 = vmatpush1.msra.mxu0 0.0
        %539 = vmatprep.subr.mxu0 0.0
        %540 = vmatpush1.msra.mxu0 0.0
        %541 = vmatprep.subr.mxu0 0.0
        %542 = vmatpush1.msra.mxu0 0.0
        %543 = vmatprep.subr.mxu0 0.0
        %544 = vmatpush1.msra.mxu0 0.0
        %545 = vmatprep.subr.mxu0 0.0
        %546 = vmatpush1.msra.mxu0 0.0
        %547 = vmatprep.subr.mxu0 0.0
        %548 = vmatpush1.msra.mxu0 0.0
        %549 = vmatprep.subr.mxu0 0.0
        %550 = vmatpush1.msra.mxu0 0.0
        %551 = vmatprep.subr.mxu0 0.0
        %552 = vmatpush1.msra.mxu0 0.0
        %553 = vmatprep.subr.mxu0 0.0
        %554 = vmatpush1.msra.mxu0 0.0
        %555 = vmatprep.subr.mxu0 0.0
        %556 = vmatpush1.msra.mxu0 0.0
        %557 = vmatprep.subr.mxu0 0.0
        %558 = vmatpush1.msra.mxu0 0.0
        %559 = vmatprep.subr.mxu0 0.0
        %560 = vmatpush1.msra.mxu0 0.0
        %561 = vmatprep.subr.mxu0 0.0
        %562 = vmatpush1.msra.mxu0 0.0
        %563 = vmatprep.subr.mxu0 0.0
        %564 = vmatpush1.msra.mxu0 0.0
        %565 = vmatprep.subr.mxu0 0.0
        %566 = vmatpush1.msra.mxu0 0.0
        %567 = vmatprep.subr.mxu0 0.0
        %568 = vmatpush1.msra.mxu0 0.0
        %569 = vmatprep.subr.mxu0 0.0
        %570 = vmatpush1.msra.mxu0 0.0
        %571 = vmatprep.subr.mxu0 0.0
        %572 = vmatpush1.msra.mxu0 0.0
        %573 = vmatprep.subr.mxu0 0.0
        %574 = vmatpush1.msra.mxu0 0.0
        %575 = vmatprep.subr.mxu0 0.0
        %576 = vmatpush1.msra.mxu0 0.0
        %577 = vmatprep.subr.mxu0 0.0
        %578 = vmatpush1.msra.mxu0 0.0
        %579 = vmatprep.subr.mxu0 0.0
        %580 = vmatpush1.msra.mxu0 0.0
        %581 = vmatprep.subr.mxu0 0.0
        %582 = vmatpush1.msra.mxu0 0.0
        %583 = vmatprep.mubr.f32.mxu0 0.0
        %584 = vmatmul.mubr.f32.gmra.mrb[0].mxu0 %v504
        %v585 = vpop.f32.mrb[0].mxu0
        %v586 = vadd.f32 %v485, %v585
        %v587 = vpop.f32.mrb[0].mxu0
        %588 = vmatprep.mubr.f32.mxu0 0.0
        %589 = vmatmul.mubr.f32.gmra.mrb[0].mxu0 %v507
        %v590 = vpop.f32.mrb[0].mxu0
        %v591 = vadd.f32 %v490, %v590
        %v592 = vpop.f32.mrb[0].mxu0
        %593 = vmatprep.mubr.f32.mxu0 0.0
        %594 = vmatmul.mubr.f32.gmra.mrb[0].mxu0 %v510
        %v595 = vpop.f32.mrb[0].mxu0
        %v596 = vadd.f32 %v495, %v595
        %v597 = vpop.f32.mrb[0].mxu0
        %598 = vmatprep.mubr.f32.mxu0 0.0
        %599 = vmatmul.mubr.f32.gmra.mrb[0].mxu0 %v513
        %v600 = vpop.f32.mrb[0].mxu0
        %v601 = vadd.f32 %v500, %v600
        %v602 = vpop.f32.mrb[0].mxu0
        %603 = vdwg.mxu0
        %v604 = vtanh.pop %v586
        %v605 = vtanh.pop %v591
        %v606 = vtanh.pop %v596
        %v607 = vtanh.pop %v601
        %v608 = vld [vmem:[%s5] sm:$0x1]
        %v609 = vld [vmem:[#allocation2] sm:$0x1]
        %611 = vset.pattern.permute.xlu0 0
        %612 = vperm.xlu0 %611, %v609
        %v613 = vpop.permute.xlu0 %612
        %v615 = vlaneseq
        %v616 = vshrl.u32 %v615, 7
        %v617 = vsub.s32 0, %v616
        %v618 = vrot.slane %v613, %v617
        %v620 = vsel %vm502, %v608, 0
        %v623 = vsel %vm515, %v607, 0
        %625 = vmatprep.subr.mxu0 0.0
        %626 = vmatpush1.msra.mxu0 %v604
        %627 = vmatprep.subr.mxu0 0.0
        %628 = vmatpush1.msra.mxu0 %v605
        %629 = vmatprep.subr.mxu0 0.0
        %630 = vmatpush1.msra.mxu0 %v606
        %631 = vmatprep.subr.mxu0 0.0
        %632 = vmatpush1.msra.mxu0 %v623
        %633 = vmatprep.subr.mxu0 0.0
        %634 = vmatpush1.msra.mxu0 0.0
        %635 = vmatprep.subr.mxu0 0.0
        %636 = vmatpush1.msra.mxu0 0.0
        %637 = vmatprep.subr.mxu0 0.0
        %638 = vmatpush1.msra.mxu0 0.0
        %639 = vmatprep.subr.mxu0 0.0
        %640 = vmatpush1.msra.mxu0 0.0
        %641 = vmatprep.subr.mxu0 0.0
        %642 = vmatpush1.msra.mxu0 0.0
        %643 = vmatprep.subr.mxu0 0.0
        %644 = vmatpush1.msra.mxu0 0.0
        %645 = vmatprep.subr.mxu0 0.0
        %646 = vmatpush1.msra.mxu0 0.0
        %647 = vmatprep.subr.mxu0 0.0
        %648 = vmatpush1.msra.mxu0 0.0
        %649 = vmatprep.subr.mxu0 0.0
        %650 = vmatpush1.msra.mxu0 0.0
        %651 = vmatprep.subr.mxu0 0.0
        %652 = vmatpush1.msra.mxu0 0.0
        %653 = vmatprep.subr.mxu0 0.0
        %654 = vmatpush1.msra.mxu0 0.0
        %655 = vmatprep.subr.mxu0 0.0
        %656 = vmatpush1.msra.mxu0 0.0
        %657 = vmatprep.subr.mxu0 0.0
        %658 = vmatpush1.msra.mxu0 0.0
        %659 = vmatprep.subr.mxu0 0.0
        %660 = vmatpush1.msra.mxu0 0.0
        %661 = vmatprep.subr.mxu0 0.0
        %662 = vmatpush1.msra.mxu0 0.0
        %663 = vmatprep.subr.mxu0 0.0
        %664 = vmatpush1.msra.mxu0 0.0
        %665 = vmatprep.subr.mxu0 0.0
        %666 = vmatpush1.msra.mxu0 0.0
        %667 = vmatprep.subr.mxu0 0.0
        %668 = vmatpush1.msra.mxu0 0.0
        %669 = vmatprep.subr.mxu0 0.0
        %670 = vmatpush1.msra.mxu0 0.0
        %671 = vmatprep.subr.mxu0 0.0
        %672 = vmatpush1.msra.mxu0 0.0
        %673 = vmatprep.subr.mxu0 0.0
        %674 = vmatpush1.msra.mxu0 0.0
        %675 = vmatprep.subr.mxu0 0.0
        %676 = vmatpush1.msra.mxu0 0.0
        %677 = vmatprep.subr.mxu0 0.0
        %678 = vmatpush1.msra.mxu0 0.0
        %679 = vmatprep.subr.mxu0 0.0
        %680 = vmatpush1.msra.mxu0 0.0
        %681 = vmatprep.subr.mxu0 0.0
        %682 = vmatpush1.msra.mxu0 0.0
        %683 = vmatprep.subr.mxu0 0.0
        %684 = vmatpush1.msra.mxu0 0.0
        %685 = vmatprep.subr.mxu0 0.0
        %686 = vmatpush1.msra.mxu0 0.0
        %687 = vmatprep.subr.mxu0 0.0
        %688 = vmatpush1.msra.mxu0 0.0
        %689 = vmatprep.mubr.f32.mxu0 0.0
        %690 = vmatmul.mubr.f32.gmra.mrb[0].mxu0 %v620
        %v691 = vpop.f32.mrb[0].mxu0
        %v692 = vadd.f32 %v618, %v691
        %v693 = vpop.f32.mrb[0].mxu0
        %694 = vdwg.mxu0
        %v695 = vtanh.pop %v692
        %696 = vst [vmem:[%s273] sm:$0x1] %v695
        %s697 = sand.u32 %s183, 1
        %s698 = scalar_lea.sflag [#allocation4], %s697
        %s699 = sand.u32 %s183, 1
        %s700 = scalar_lea.vmem [#allocation3], %s699
        // Predicated region
        $region49: #{tpu_custom_call.1} parent=47 // pred_check
          %p701 = pneg %p193
        $region50: #{tpu_custom_call.1} parent=47 // pred_check_branch
          %703 = sbr.rel (%p701) target = $region52
        $region51: #{tpu_custom_call.1} parent=47 // pred_region
          %s705 = ssub.s32 16, 16
          %706 = vsyncadd %s698, %s705
          %s707 = smul.addr %s23, 16
          %s708 = scalar_lea.hbm %s7, %s707
          %s710 = sshll.u32 %s700, 4
          %s711 = int_to_ptr.vmem [resolvable:$true] %s710
          %713 = dma.vmem_to_hbm [thread:$0]  %s711, 16, %s708, %s698
        $region52: #{tpu_custom_call.1} parent=47 // pred_fallthru
          _
      $region48: #{tpu_custom_call.1} parent=5 // pred_fallthru
        _
      %p714 = scmp.le.s32.totalorder 2, %s18
      // Predicated region
      $region53: #{tpu_custom_call.1} parent=5 // pred_check
        %p715 = pneg %p714
      $region54: #{tpu_custom_call.1} parent=5 // pred_check_branch
        %717 = sbr.rel (%p715) target = $region56
      $region55: #{tpu_custom_call.1} parent=5 // pred_region
        %s718 = ssub.s32 %s18, 2
        // Predicated region
        $region57: #{tpu_custom_call.1} parent=55 // pred_check
          %p719 = pneg %p199
        $region58: #{tpu_custom_call.1} parent=55 // pred_check_branch
          %721 = sbr.rel (%p719) target = $region60
        $region59: #{tpu_custom_call.1} parent=55 // pred_region
          %s722 = sand.u32 %s184, 1
          %s723 = scalar_lea.sflag [#allocation4], %s722
          %s724 = sand.u32 %s184, 1
          %s725 = scalar_lea.vmem [#allocation3], %s724
          %726 = dma.done %s723, 16
        $region60: #{tpu_custom_call.1} parent=55 // pred_fallthru
          _
      $region56: #{tpu_custom_call.1} parent=5 // pred_fallthru
        _
    $region6: #{tpu_custom_call.1} parent=1 // loop_footer
      %s22 = sadd.s32 1, %s18
    $region7: #{tpu_custom_call.1} parent=1 // loop_footer_branch
      %17 = sbr.rel target = $region3
    $region8: #{tpu_custom_call.1} parent=1 // loop_exit
      _
    %727 = vsyncpa [#allocation4], 1
    %s728 = scalar_lea.sflag [#allocation4], 1
    %729 = vsyncpa %s728, 1

</llo_original>
